<compile_context>
chip_gen: v6e
topology: v6e:2x2x1
jax: 0.10.0
libtpu: 0.0.40
codegen_flags: <defaults>
</compile_context>

<pallas_src>
import jax
import jax.numpy as jnp
from jax.experimental import pallas as pl
from jax.experimental.pallas import tpu as pltpu

EPS = 1e-5


def residual5_kernel(x_ref, p_ref, w1_ref, w2_ref, o_ref):
    # p_ref: (6, Dmax) f32 = [gamma1; beta1; fc2_bias; fc1_bias; gamma2; beta2]
    # w1_ref: (xDim, H) bf16, w2_ref: (H, xDim) bf16 (pre-transposed for x @ w).
    x = x_ref[...].astype(jnp.float32)
    n = x.shape[0]
    xdim = x.shape[1]
    h_dim = w1_ref.shape[1]
    inv_n = 1.0 / n

    # Load the packed parameter block once, then slice the VALUE (no ref sub-slices).
    p = p_ref[...]
    g1 = p[0:1, :xdim]
    beta1 = p[1:2, :xdim]
    b2 = p[2:3, :xdim]
    b1 = p[3:4, :h_dim]
    g2 = p[4:5, :h_dim]
    beta2 = p[5:6, :h_dim]

    # Column-sum helper on the MXU (keeps the XLU free; MXU is otherwise idle here).
    ones_1n = jnp.ones((1, n), jnp.float32)

    # ---- bn1: shifted two-pass stats, folded affine, + ReLU -------------------------
    mean1 = jnp.dot(ones_1n, x, preferred_element_type=jnp.float32) * inv_n   # (1, xDim)
    xc = x - mean1
    var1 = jnp.dot(ones_1n, xc * xc, preferred_element_type=jnp.float32) * inv_n
    scale1 = g1 * jax.lax.rsqrt(var1 + EPS)
    h = jnp.maximum(xc * scale1 + beta1, 0.0)                                  # f32 (N, xDim)

    # ---- fc1 (bf16 MXU, f32 accumulation) + clamp(min=0) ----------------------------
    a = jnp.dot(h.astype(jnp.bfloat16), w1_ref[...],
                preferred_element_type=jnp.float32) + b1
    a = jnp.maximum(a, 0.0)                                                    # f32 (N, H)

    # ---- bn2: shifted two-pass stats, folded affine, + ReLU -------------------------
    mean2 = jnp.dot(ones_1n, a, preferred_element_type=jnp.float32) * inv_n    # (1, H)
    ac = a - mean2
    var2 = jnp.dot(ones_1n, ac * ac, preferred_element_type=jnp.float32) * inv_n
    scale2 = g2 * jax.lax.rsqrt(var2 + EPS)
    z = jnp.maximum(ac * scale2 + beta2, 0.0)                                  # f32 (N, H)

    # ---- fc2 (bf16 MXU, f32 accumulation) + residual --------------------------------
    out = jnp.dot(z.astype(jnp.bfloat16), w2_ref[...],
                  preferred_element_type=jnp.float32) + b2
    o_ref[...] = (out + x).astype(o_ref.dtype)


def residual5(x, p_all, w1_bf16, w2_bf16):
    """x: (N, xDim) f32; p_all: (6, Dmax) f32; w1_bf16: (xDim, H) bf16; w2_bf16: (H, xDim) bf16."""
    N, xDim = x.shape
    H = w1_bf16.shape[1]

    # Advisory cost hint so XLA can overlap this small custom call with neighbors.
    flops = 2 * N * xDim * H * 2 + 2 * N * (xDim + H) * 2   # fc1+fc2 + 4 stats dots
    bytes_accessed = (2 * x.size * x.dtype.itemsize        # x in + out (aliased)
                      + p_all.size * p_all.dtype.itemsize
                      + w1_bf16.size * 2 + w2_bf16.size * 2)
    cost = pl.CostEstimate(flops=flops,
                           transcendentals=xDim + H,        # two rsqrt rows
                           bytes_accessed=bytes_accessed)

    return pl.pallas_call(
        residual5_kernel,
        out_shape=jax.ShapeDtypeStruct((N, xDim), x.dtype),
        # Small problem: whole arrays live in one VMEM block, no grid needed.
        in_specs=[pl.BlockSpec(memory_space=pltpu.MemorySpace.VMEM)] * 4,
        out_specs=pl.BlockSpec(memory_space=pltpu.MemorySpace.VMEM),
        input_output_aliases={0: 0},   # out has x's shape/dtype; reuse the buffer
        compiler_params=pltpu.CompilerParams(vmem_limit_bytes=32 * 1024 * 1024),
        cost_estimate=cost,
    )(x, p_all, w1_bf16, w2_bf16)


def reference(x, params):
    (g1, beta1, w1, b1, g2, beta2, w2, b2) = params
    x = x.astype(jnp.float32)
    m1 = jnp.mean(x, axis=0, keepdims=True)
    v1 = jnp.mean((x - m1) ** 2, axis=0, keepdims=True)
    h = jnp.maximum((x - m1) / jnp.sqrt(v1 + EPS) * g1 + beta1, 0.0)
    a = jnp.maximum(h @ w1 + b1, 0.0)
    m2 = jnp.mean(a, axis=0, keepdims=True)
    v2 = jnp.mean((a - m2) ** 2, axis=0, keepdims=True)
    z = jnp.maximum((a - m2) / jnp.sqrt(v2 + EPS) * g2 + beta2, 0.0)
    return z @ w2 + b2 + x


if __name__ == "__main__":
    # Lane-dense shapes; N=256 fills the MXU M dimension (per perf review).
    N, xDim, H = 256, 128, 128

    key = jax.random.PRNGKey(0)
    kx, kw1, kb1, kw2, kb2 = jax.random.split(key, 5)

    x = jax.random.normal(kx, (N, xDim), dtype=jnp.float32)

    # BatchNorm affine params: PyTorch init weight=1, bias=0.
    g1 = jnp.ones((1, xDim), jnp.float32)
    beta1 = jnp.zeros((1, xDim), jnp.float32)
    g2 = jnp.ones((1, H), jnp.float32)
    beta2 = jnp.zeros((1, H), jnp.float32)

    # Linear params (deterministic synthetic init), stored pre-transposed:
    # w1: (xDim, H) so fc1(x) = x @ w1 + b1 ; w2: (H, xDim).
    w1 = jax.random.normal(kw1, (xDim, H), jnp.float32) * (1.0 / jnp.sqrt(xDim))
    b1 = jax.random.normal(kb1, (1, H), jnp.float32) * 0.01
    w2 = jax.random.normal(kw2, (H, xDim), jnp.float32) * (1.0 / jnp.sqrt(H))
    b2 = jax.random.normal(kb2, (1, xDim), jnp.float32) * 0.01

    params = (g1, beta1, w1, b1, g2, beta2, w2, b2)

    # Pack the six (1, D) vectors into ONE (6, Dmax) array (done once, outside the kernel).
    Dmax = max(xDim, H)

    def pad_row(v):
        return jnp.pad(v, ((0, 0), (0, Dmax - v.shape[1])))

    p_all = jnp.concatenate(
        [pad_row(g1), pad_row(beta1), pad_row(b2),
         pad_row(b1), pad_row(g2), pad_row(beta2)], axis=0)      # (6, Dmax) f32

    # Weights fed to the kernel in bf16 (MXU-native; f32 accumulation inside).
    w1_bf16 = w1.astype(jnp.bfloat16)
    w2_bf16 = w2.astype(jnp.bfloat16)

    # Compute reference first (kernel output aliases x's HBM buffer).
    ref = reference(x, params)
    ref = jax.block_until_ready(ref)

    out = residual5(x, p_all, w1_bf16, w2_bf16)
    out = jax.block_until_ready(out)

    assert out.shape == (N, xDim)
    # bf16 MXU path: expect ~1e-2-level mixed-precision error vs. the f32 reference.
    assert jnp.allclose(out, ref, atol=5e-2, rtol=5e-2)

    print("KERNEL_OK")
</pallas_src>

<mosaic_0001>
module attributes {stable_mosaic.version = 11 : i64} {
  func.func @residual5_kernel(%arg0: memref<256x128xf32, #tpu.memory_space<vmem>>, %arg1: memref<6x128xf32, #tpu.memory_space<vmem>>, %arg2: memref<128x128xbf16, #tpu.memory_space<vmem>>, %arg3: memref<128x128xbf16, #tpu.memory_space<vmem>>, %arg4: memref<256x128xf32, #tpu.memory_space<vmem>>) attributes {dimension_semantics = [], scalar_prefetch = 0 : i64, scratch_operands = 0 : i64, tpu.core_type = #tpu.core_type<tc>} {
    %c0 = arith.constant 0 : index
    %c0_0 = arith.constant 0 : index
    %0 = vector.load %arg0[%c0, %c0_0] : memref<256x128xf32, #tpu.memory_space<vmem>>, vector<256x128xf32>
    %c0_1 = arith.constant 0 : index
    %c0_2 = arith.constant 0 : index
    %1 = vector.load %arg1[%c0_1, %c0_2] : memref<6x128xf32, #tpu.memory_space<vmem>>, vector<6x128xf32>
    %2 = vector.extract_strided_slice %1 {offsets = [0, 0], sizes = [1, 128], strides = [1, 1]} : vector<6x128xf32> to vector<1x128xf32>
    %3 = vector.extract_strided_slice %1 {offsets = [1, 0], sizes = [1, 128], strides = [1, 1]} : vector<6x128xf32> to vector<1x128xf32>
    %4 = vector.extract_strided_slice %1 {offsets = [2, 0], sizes = [1, 128], strides = [1, 1]} : vector<6x128xf32> to vector<1x128xf32>
    %5 = vector.extract_strided_slice %1 {offsets = [3, 0], sizes = [1, 128], strides = [1, 1]} : vector<6x128xf32> to vector<1x128xf32>
    %6 = vector.extract_strided_slice %1 {offsets = [4, 0], sizes = [1, 128], strides = [1, 1]} : vector<6x128xf32> to vector<1x128xf32>
    %7 = vector.extract_strided_slice %1 {offsets = [5, 0], sizes = [1, 128], strides = [1, 1]} : vector<6x128xf32> to vector<1x128xf32>
    %cst = arith.constant 1.000000e+00 : f32
    %8 = vector.broadcast %cst : f32 to vector<1x256xf32>
    %cst_3 = arith.constant dense<0.000000e+00> : vector<1x128xf32>
    %9 = tpu.matmul %8, %0, %cst_3 {dimension_numbers = #tpu.dot_dimension_numbers<[1], [0], [0], [1], [0, 0, 1, 1], [], []>} : vector<1x256xf32>, vector<256x128xf32>, vector<1x128xf32> -> vector<1x128xf32>
    %cst_4 = arith.constant 3.906250e-03 : f32
    %10 = vector.broadcast %cst_4 : f32 to vector<1x128xf32>
    %11 = arith.mulf %9, %10 : vector<1x128xf32>
    %12 = vector.broadcast %11 : vector<1x128xf32> to vector<256x128xf32>
    %13 = arith.subf %0, %12 : vector<256x128xf32>
    %14 = arith.mulf %13, %13 : vector<256x128xf32>
    %cst_5 = arith.constant dense<0.000000e+00> : vector<1x128xf32>
    %15 = tpu.matmul %8, %14, %cst_5 {dimension_numbers = #tpu.dot_dimension_numbers<[1], [0], [0], [1], [0, 0, 1, 1], [], []>} : vector<1x256xf32>, vector<256x128xf32>, vector<1x128xf32> -> vector<1x128xf32>
    %cst_6 = arith.constant 3.906250e-03 : f32
    %16 = vector.broadcast %cst_6 : f32 to vector<1x128xf32>
    %17 = arith.mulf %15, %16 : vector<1x128xf32>
    %cst_7 = arith.constant 9.99999974E-6 : f32
    %18 = vector.broadcast %cst_7 : f32 to vector<1x128xf32>
    %19 = arith.addf %17, %18 : vector<1x128xf32>
    %20 = math.rsqrt %19 : vector<1x128xf32>
    %21 = arith.mulf %2, %20 : vector<1x128xf32>
    %22 = vector.broadcast %21 : vector<1x128xf32> to vector<256x128xf32>
    %23 = arith.mulf %13, %22 : vector<256x128xf32>
    %24 = vector.broadcast %3 : vector<1x128xf32> to vector<256x128xf32>
    %25 = arith.addf %23, %24 : vector<256x128xf32>
    %cst_8 = arith.constant 0.000000e+00 : f32
    %26 = vector.broadcast %cst_8 : f32 to vector<256x128xf32>
    %27 = arith.maximumf %25, %26 : vector<256x128xf32>
    %28 = arith.truncf %27 : vector<256x128xf32> to vector<256x128xbf16>
    %c0_9 = arith.constant 0 : index
    %c0_10 = arith.constant 0 : index
    %29 = vector.load %arg2[%c0_9, %c0_10] : memref<128x128xbf16, #tpu.memory_space<vmem>>, vector<128x128xbf16>
    %cst_11 = arith.constant dense<0.000000e+00> : vector<256x128xf32>
    %30 = tpu.matmul %28, %29, %cst_11 {dimension_numbers = #tpu.dot_dimension_numbers<[1], [0], [0], [1], [0, 0, 1, 1], [], []>} : vector<256x128xbf16>, vector<128x128xbf16>, vector<256x128xf32> -> vector<256x128xf32>
    %31 = vector.broadcast %5 : vector<1x128xf32> to vector<256x128xf32>
    %32 = arith.addf %30, %31 : vector<256x128xf32>
    %cst_12 = arith.constant 0.000000e+00 : f32
    %33 = vector.broadcast %cst_12 : f32 to vector<256x128xf32>
    %34 = arith.maximumf %32, %33 : vector<256x128xf32>
    %cst_13 = arith.constant dense<0.000000e+00> : vector<1x128xf32>
    %35 = tpu.matmul %8, %34, %cst_13 {dimension_numbers = #tpu.dot_dimension_numbers<[1], [0], [0], [1], [0, 0, 1, 1], [], []>} : vector<1x256xf32>, vector<256x128xf32>, vector<1x128xf32> -> vector<1x128xf32>
    %cst_14 = arith.constant 3.906250e-03 : f32
    %36 = vector.broadcast %cst_14 : f32 to vector<1x128xf32>
    %37 = arith.mulf %35, %36 : vector<1x128xf32>
    %38 = vector.broadcast %37 : vector<1x128xf32> to vector<256x128xf32>
    %39 = arith.subf %34, %38 : vector<256x128xf32>
    %40 = arith.mulf %39, %39 : vector<256x128xf32>
    %cst_15 = arith.constant dense<0.000000e+00> : vector<1x128xf32>
    %41 = tpu.matmul %8, %40, %cst_15 {dimension_numbers = #tpu.dot_dimension_numbers<[1], [0], [0], [1], [0, 0, 1, 1], [], []>} : vector<1x256xf32>, vector<256x128xf32>, vector<1x128xf32> -> vector<1x128xf32>
    %cst_16 = arith.constant 3.906250e-03 : f32
    %42 = vector.broadcast %cst_16 : f32 to vector<1x128xf32>
    %43 = arith.mulf %41, %42 : vector<1x128xf32>
    %cst_17 = arith.constant 9.99999974E-6 : f32
    %44 = vector.broadcast %cst_17 : f32 to vector<1x128xf32>
    %45 = arith.addf %43, %44 : vector<1x128xf32>
    %46 = math.rsqrt %45 : vector<1x128xf32>
    %47 = arith.mulf %6, %46 : vector<1x128xf32>
    %48 = vector.broadcast %47 : vector<1x128xf32> to vector<256x128xf32>
    %49 = arith.mulf %39, %48 : vector<256x128xf32>
    %50 = vector.broadcast %7 : vector<1x128xf32> to vector<256x128xf32>
    %51 = arith.addf %49, %50 : vector<256x128xf32>
    %cst_18 = arith.constant 0.000000e+00 : f32
    %52 = vector.broadcast %cst_18 : f32 to vector<256x128xf32>
    %53 = arith.maximumf %51, %52 : vector<256x128xf32>
    %54 = arith.truncf %53 : vector<256x128xf32> to vector<256x128xbf16>
    %c0_19 = arith.constant 0 : index
    %c0_20 = arith.constant 0 : index
    %55 = vector.load %arg3[%c0_19, %c0_20] : memref<128x128xbf16, #tpu.memory_space<vmem>>, vector<128x128xbf16>
    %cst_21 = arith.constant dense<0.000000e+00> : vector<256x128xf32>
    %56 = tpu.matmul %54, %55, %cst_21 {dimension_numbers = #tpu.dot_dimension_numbers<[1], [0], [0], [1], [0, 0, 1, 1], [], []>} : vector<256x128xbf16>, vector<128x128xbf16>, vector<256x128xf32> -> vector<256x128xf32>
    %57 = vector.broadcast %4 : vector<1x128xf32> to vector<256x128xf32>
    %58 = arith.addf %56, %57 : vector<256x128xf32>
    %59 = arith.addf %58, %0 : vector<256x128xf32>
    %c0_22 = arith.constant 0 : index
    %c0_23 = arith.constant 0 : index
    %60 = vector.load %arg4[%c0_22, %c0_23] : memref<256x128xf32, #tpu.memory_space<vmem>>, vector<256x128xf32>
    tpu.vector_store %arg4[%c0_22, %c0_23], %59 {strides = array<i32>} : memref<256x128xf32, #tpu.memory_space<vmem>>, vector<256x128xf32>,
    return
  }
}

</mosaic_0001>

<llo_original>
// kernel: tpu_custom_call.1
$region0: #{tpu_custom_call.1}
  #allocation0 [shape = 'u32[]', space=smem, size = 0x4, offset = 0x4, fixed_abs, tag = 'smem constant byte address 0x4 - core index']
  #allocation1 [shape = 'u32[144,128]{1,0:T(1,128)}', space=vmem, size = 0x12000, scoped, tag = 'internal scratch']
  %s0 = inlined_call_operand.hbm [shape: f32[256,128], index: 0, kind: input, shape index: {}, may-alias: {0,4}]
  %s1 = inlined_call_operand.vmem [shape: f32[6,128], index: 1, kind: input, shape index: {}]
  %s2 = inlined_call_operand.vmem [shape: bf16[128,128], index: 2, kind: input, shape index: {}]
  %s3 = inlined_call_operand.vmem [shape: bf16[128,128], index: 3, kind: input, shape index: {}]
  %s4 = inlined_call_operand.hbm [shape: f32[256,128], index: 4, kind: output, shape index: {}, may-alias: {0,4}]
  %s5 = sld [smem:[#allocation0]]
  $region30: #{tpu_custom_call.1} parent=0
    _
  %s7 = ssub.s32 1, %s5
  %s8 = scalar_select 0, %s7, %s5
  $region1: #{tpu_custom_call.1} parent=0
    #allocation2 [shape = 'u8[131072]{0}', space=vmem, size = 0x20000, scoped, tag = 'input window, operand 0, single buffered']
    #allocation3 [shape = 's32[1]{0}', space=sflag, size = 0x4, scoped, tag = 'scoped memory for tpu_custom_call.1']
    #allocation4 [shape = 's32[1]{0}', space=sflag, size = 0x4, scoped, tag = 'scoped memory for tpu_custom_call.1']
    #allocation5 [shape = 'u8[131072]{0}', space=vmem, size = 0x20000, scoped, tag = 'output window, operand 0, single buffered']
    %9 = vsyncpa [#allocation3], 0
    %10 = vsyncpa [#allocation4], 0
    // Predicated region
    $region2: #{tpu_custom_call.1} parent=1 // pred_check
      _
    $region3: #{tpu_custom_call.1} parent=1 // pred_check_branch
      %12 = sbr.rel (0) target = $region5
    $region4: #{tpu_custom_call.1} parent=1 // pred_region
      %s14 = ssub.s32 4096, 4096
      %15 = vsyncadd [#allocation3], %s14
      %s16 = sshll.u32 [#allocation2], 4
      %s17 = int_to_ptr.vmem [resolvable:$true] %s16
      %22 = dma.hbm_to_vmem [thread:$0]  %s0, 4096, %s17, [#allocation3], 128, 128, 8
    $region5: #{tpu_custom_call.1} parent=1 // pred_fallthru
      _
    // Predicated region
    $region6: #{tpu_custom_call.1} parent=1 // pred_check
      _
    $region7: #{tpu_custom_call.1} parent=1 // pred_check_branch
      %24 = sbr.rel (0) target = $region9
    $region8: #{tpu_custom_call.1} parent=1 // pred_region
      _
    $region9: #{tpu_custom_call.1} parent=1 // pred_fallthru
      _
    // Predicated region
    $region10: #{tpu_custom_call.1} parent=1 // pred_check
      _
    $region11: #{tpu_custom_call.1} parent=1 // pred_check_branch
      %26 = sbr.rel (0) target = $region13
    $region12: #{tpu_custom_call.1} parent=1 // pred_region
      _
    $region13: #{tpu_custom_call.1} parent=1 // pred_fallthru
      _
    // Predicated region
    $region14: #{tpu_custom_call.1} parent=1 // pred_check
      _
    $region15: #{tpu_custom_call.1} parent=1 // pred_check_branch
      %28 = sbr.rel (0) target = $region17
    $region16: #{tpu_custom_call.1} parent=1 // pred_region
      _
    $region17: #{tpu_custom_call.1} parent=1 // pred_fallthru
      _
    // Predicated region
    $region18: #{tpu_custom_call.1} parent=1 // pred_check
      _
    $region19: #{tpu_custom_call.1} parent=1 // pred_check_branch
      %30 = sbr.rel (0) target = $region21
    $region20: #{tpu_custom_call.1} parent=1 // pred_region
      %31 = dma.done [#allocation3], 4096
    $region21: #{tpu_custom_call.1} parent=1 // pred_fallthru
      _
    %v33 = vld [vmem:[#allocation2] sm:$0xff]
    %v34 = vld [vmem:[#allocation2 + $0x8] sm:$0xff]
    %v35 = vld [vmem:[#allocation2 + $0x10] sm:$0xff]
    %v36 = vld [vmem:[#allocation2 + $0x18] sm:$0xff]
    %v37 = vld [vmem:[#allocation2 + $0x20] sm:$0xff]
    %v38 = vld [vmem:[#allocation2 + $0x28] sm:$0xff]
    %v39 = vld [vmem:[#allocation2 + $0x30] sm:$0xff]
    %v40 = vld [vmem:[#allocation2 + $0x38] sm:$0xff]
    %v41 = vld [vmem:[#allocation2 + $0x40] sm:$0xff]
    %v42 = vld [vmem:[#allocation2 + $0x48] sm:$0xff]
    %v43 = vld [vmem:[#allocation2 + $0x50] sm:$0xff]
    %v44 = vld [vmem:[#allocation2 + $0x58] sm:$0xff]
    %v45 = vld [vmem:[#allocation2 + $0x60] sm:$0xff]
    %v46 = vld [vmem:[#allocation2 + $0x68] sm:$0xff]
    %v47 = vld [vmem:[#allocation2 + $0x70] sm:$0xff]
    %v48 = vld [vmem:[#allocation2 + $0x78] sm:$0xff]
    %v49 = vld [vmem:[#allocation2 + $0x80] sm:$0xff]
    %v50 = vld [vmem:[#allocation2 + $0x88] sm:$0xff]
    %v51 = vld [vmem:[#allocation2 + $0x90] sm:$0xff]
    %v52 = vld [vmem:[#allocation2 + $0x98] sm:$0xff]
    %v53 = vld [vmem:[#allocation2 + $0xa0] sm:$0xff]
    %v54 = vld [vmem:[#allocation2 + $0xa8] sm:$0xff]
    %v55 = vld [vmem:[#allocation2 + $0xb0] sm:$0xff]
    %v56 = vld [vmem:[#allocation2 + $0xb8] sm:$0xff]
    %v57 = vld [vmem:[#allocation2 + $0xc0] sm:$0xff]
    %v58 = vld [vmem:[#allocation2 + $0xc8] sm:$0xff]
    %v59 = vld [vmem:[#allocation2 + $0xd0] sm:$0xff]
    %v60 = vld [vmem:[#allocation2 + $0xd8] sm:$0xff]
    %v61 = vld [vmem:[#allocation2 + $0xe0] sm:$0xff]
    %v62 = vld [vmem:[#allocation2 + $0xe8] sm:$0xff]
    %v63 = vld [vmem:[#allocation2 + $0xf0] sm:$0xff]
    %v64 = vld [vmem:[#allocation2 + $0xf8] sm:$0xff]
    %v65 = vld [vmem:[%s1] sm:$0x3f]
    %66 = vmatprep.subr.mxu0 0.0
    %67 = vmatpush1.msra.mxu0 %v48
    %68 = vmatprep.subr.mxu0 0.0
    %69 = vmatpush1.msra.mxu0 %v47
    %70 = vmatprep.subr.mxu0 0.0
    %71 = vmatpush1.msra.mxu0 %v46
    %72 = vmatprep.subr.mxu0 0.0
    %73 = vmatpush1.msra.mxu0 %v45
    %74 = vmatprep.subr.mxu0 0.0
    %75 = vmatpush1.msra.mxu0 %v44
    %76 = vmatprep.subr.mxu0 0.0
    %77 = vmatpush1.msra.mxu0 %v43
    %78 = vmatprep.subr.mxu0 0.0
    %79 = vmatpush1.msra.mxu0 %v42
    %80 = vmatprep.subr.mxu0 0.0
    %81 = vmatpush1.msra.mxu0 %v41
    %82 = vmatprep.subr.mxu0 0.0
    %83 = vmatpush1.msra.mxu0 %v40
    %84 = vmatprep.subr.mxu0 0.0
    %85 = vmatpush1.msra.mxu0 %v39
    %86 = vmatprep.subr.mxu0 0.0
    %87 = vmatpush1.msra.mxu0 %v38
    %88 = vmatprep.subr.mxu0 0.0
    %89 = vmatpush1.msra.mxu0 %v37
    %90 = vmatprep.subr.mxu0 0.0
    %91 = vmatpush1.msra.mxu0 %v36
    %92 = vmatprep.subr.mxu0 0.0
    %93 = vmatpush1.msra.mxu0 %v35
    %94 = vmatprep.subr.mxu0 0.0
    %95 = vmatpush1.msra.mxu0 %v34
    %96 = vmatprep.subr.mxu0 0.0
    %97 = vmatpush1.msra.mxu0 %v33
    %98 = vmatprep.subr.mxu0 0.0
    %99 = vmatpush2.msra.mxu0 %v64
    %100 = vmatprep.subr.mxu0 0.0
    %101 = vmatpush2.msra.mxu0 %v63
    %102 = vmatprep.subr.mxu0 0.0
    %103 = vmatpush2.msra.mxu0 %v62
    %104 = vmatprep.subr.mxu0 0.0
    %105 = vmatpush2.msra.mxu0 %v61
    %106 = vmatprep.subr.mxu0 0.0
    %107 = vmatpush2.msra.mxu0 %v60
    %108 = vmatprep.subr.mxu0 0.0
    %109 = vmatpush2.msra.mxu0 %v59
    %110 = vmatprep.subr.mxu0 0.0
    %111 = vmatpush2.msra.mxu0 %v58
    %112 = vmatprep.subr.mxu0 0.0
    %113 = vmatpush2.msra.mxu0 %v57
    %114 = vmatprep.subr.mxu0 0.0
    %115 = vmatpush2.msra.mxu0 %v56
    %116 = vmatprep.subr.mxu0 0.0
    %117 = vmatpush2.msra.mxu0 %v55
    %118 = vmatprep.subr.mxu0 0.0
    %119 = vmatpush2.msra.mxu0 %v54
    %120 = vmatprep.subr.mxu0 0.0
    %121 = vmatpush2.msra.mxu0 %v53
    %122 = vmatprep.subr.mxu0 0.0
    %123 = vmatpush2.msra.mxu0 %v52
    %124 = vmatprep.subr.mxu0 0.0
    %125 = vmatpush2.msra.mxu0 %v51
    %126 = vmatprep.subr.mxu0 0.0
    %127 = vmatpush2.msra.mxu0 %v50
    %128 = vmatprep.subr.mxu0 0.0
    %129 = vmatpush2.msra.mxu0 %v49
    %130 = vmatprep.mubr.f32.mxu0 1.0
    %131 = vmatmul.mubr.f32.gmra.mxu0 1.0
    %v132 = vpop.f32.mrf.mxu0
    %v133 = vadd.f32 0.0, %v132
    %v134 = vpop.f32.mrf.mxu0
    %135 = vdwg.mxu0
    %v136 = vmul.f32 %v133, 0.00390625
    %v137 = vlaneseq
    %v138 = vshrl.u32 %v137, 7
    %v139 = vsub.s32 0, %v138
    %v140 = vrot.slane %v136, %v139
    %v141 = vsub.f32 %v33, %v140
    %v142 = vsub.f32 %v34, %v140
    %v143 = vsub.f32 %v35, %v140
    %v144 = vsub.f32 %v36, %v140
    %v145 = vsub.f32 %v37, %v140
    %v146 = vsub.f32 %v38, %v140
    %v147 = vsub.f32 %v39, %v140
    %v148 = vsub.f32 %v40, %v140
    %v149 = vsub.f32 %v41, %v140
    %v150 = vsub.f32 %v42, %v140
    %v151 = vsub.f32 %v43, %v140
    %v152 = vsub.f32 %v44, %v140
    %v153 = vsub.f32 %v45, %v140
    %v154 = vsub.f32 %v46, %v140
    %v155 = vsub.f32 %v47, %v140
    %v156 = vsub.f32 %v48, %v140
    %v157 = vsub.f32 %v49, %v140
    %v158 = vsub.f32 %v50, %v140
    %v159 = vsub.f32 %v51, %v140
    %v160 = vsub.f32 %v52, %v140
    %v161 = vsub.f32 %v53, %v140
    %v162 = vsub.f32 %v54, %v140
    %v163 = vsub.f32 %v55, %v140
    %v164 = vsub.f32 %v56, %v140
    %v165 = vsub.f32 %v57, %v140
    %v166 = vsub.f32 %v58, %v140
    %v167 = vsub.f32 %v59, %v140
    %v168 = vsub.f32 %v60, %v140
    %v169 = vsub.f32 %v61, %v140
    %v170 = vsub.f32 %v62, %v140
    %v171 = vsub.f32 %v63, %v140
    %v172 = vsub.f32 %v64, %v140
    %v173 = vmul.f32 %v141, %v141
    %v174 = vmul.f32 %v142, %v142
    %v175 = vmul.f32 %v143, %v143
    %v176 = vmul.f32 %v144, %v144
    %v177 = vmul.f32 %v145, %v145
    %v178 = vmul.f32 %v146, %v146
    %v179 = vmul.f32 %v147, %v147
    %v180 = vmul.f32 %v148, %v148
    %v181 = vmul.f32 %v149, %v149
    %v182 = vmul.f32 %v150, %v150
    %v183 = vmul.f32 %v151, %v151
    %v184 = vmul.f32 %v152, %v152
    %v185 = vmul.f32 %v153, %v153
    %v186 = vmul.f32 %v154, %v154
    %v187 = vmul.f32 %v155, %v155
    %v188 = vmul.f32 %v156, %v156
    %v189 = vmul.f32 %v157, %v157
    %v190 = vmul.f32 %v158, %v158
    %v191 = vmul.f32 %v159, %v159
    %v192 = vmul.f32 %v160, %v160
    %v193 = vmul.f32 %v161, %v161
    %v194 = vmul.f32 %v162, %v162
    %v195 = vmul.f32 %v163, %v163
    %v196 = vmul.f32 %v164, %v164
    %v197 = vmul.f32 %v165, %v165
    %v198 = vmul.f32 %v166, %v166
    %v199 = vmul.f32 %v167, %v167
    %v200 = vmul.f32 %v168, %v168
    %v201 = vmul.f32 %v169, %v169
    %v202 = vmul.f32 %v170, %v170
    %v203 = vmul.f32 %v171, %v171
    %v204 = vmul.f32 %v172, %v172
    %205 = vmatprep.subr.mxu0 0.0
    %206 = vmatpush1.msra.mxu0 %v188
    %207 = vmatprep.subr.mxu0 0.0
    %208 = vmatpush1.msra.mxu0 %v187
    %209 = vmatprep.subr.mxu0 0.0
    %210 = vmatpush1.msra.mxu0 %v186
    %211 = vmatprep.subr.mxu0 0.0
    %212 = vmatpush1.msra.mxu0 %v185
    %213 = vmatprep.subr.mxu0 0.0
    %214 = vmatpush1.msra.mxu0 %v184
    %215 = vmatprep.subr.mxu0 0.0
    %216 = vmatpush1.msra.mxu0 %v183
    %217 = vmatprep.subr.mxu0 0.0
    %218 = vmatpush1.msra.mxu0 %v182
    %219 = vmatprep.subr.mxu0 0.0
    %220 = vmatpush1.msra.mxu0 %v181
    %221 = vmatprep.subr.mxu0 0.0
    %222 = vmatpush1.msra.mxu0 %v180
    %223 = vmatprep.subr.mxu0 0.0
    %224 = vmatpush1.msra.mxu0 %v179
    %225 = vmatprep.subr.mxu0 0.0
    %226 = vmatpush1.msra.mxu0 %v178
    %227 = vmatprep.subr.mxu0 0.0
    %228 = vmatpush1.msra.mxu0 %v177
    %229 = vmatprep.subr.mxu0 0.0
    %230 = vmatpush1.msra.mxu0 %v176
    %231 = vmatprep.subr.mxu0 0.0
    %232 = vmatpush1.msra.mxu0 %v175
    %233 = vmatprep.subr.mxu0 0.0
    %234 = vmatpush1.msra.mxu0 %v174
    %235 = vmatprep.subr.mxu0 0.0
    %236 = vmatpush1.msra.mxu0 %v173
    %237 = vmatprep.subr.mxu0 0.0
    %238 = vmatpush2.msra.mxu0 %v204
    %239 = vmatprep.subr.mxu0 0.0
    %240 = vmatpush2.msra.mxu0 %v203
    %241 = vmatprep.subr.mxu0 0.0
    %242 = vmatpush2.msra.mxu0 %v202
    %243 = vmatprep.subr.mxu0 0.0
    %244 = vmatpush2.msra.mxu0 %v201
    %245 = vmatprep.subr.mxu0 0.0
    %246 = vmatpush2.msra.mxu0 %v200
    %247 = vmatprep.subr.mxu0 0.0
    %248 = vmatpush2.msra.mxu0 %v199
    %249 = vmatprep.subr.mxu0 0.0
    %250 = vmatpush2.msra.mxu0 %v198
    %251 = vmatprep.subr.mxu0 0.0
    %252 = vmatpush2.msra.mxu0 %v197
    %253 = vmatprep.subr.mxu0 0.0
    %254 = vmatpush2.msra.mxu0 %v196
    %255 = vmatprep.subr.mxu0 0.0
    %256 = vmatpush2.msra.mxu0 %v195
    %257 = vmatprep.subr.mxu0 0.0
    %258 = vmatpush2.msra.mxu0 %v194
    %259 = vmatprep.subr.mxu0 0.0
    %260 = vmatpush2.msra.mxu0 %v193
    %261 = vmatprep.subr.mxu0 0.0
    %262 = vmatpush2.msra.mxu0 %v192
    %263 = vmatprep.subr.mxu0 0.0
    %264 = vmatpush2.msra.mxu0 %v191
    %265 = vmatprep.subr.mxu0 0.0
    %266 = vmatpush2.msra.mxu0 %v190
    %267 = vmatprep.subr.mxu0 0.0
    %268 = vmatpush2.msra.mxu0 %v189
    %269 = vmatprep.mubr.f32.mxu0 1.0
    %270 = vmatmul.mubr.f32.gmra.mxu0 1.0
    %v271 = vpop.f32.mrf.mxu0
    %v272 = vadd.f32 0.0, %v271
    %v273 = vpop.f32.mrf.mxu0
    %274 = vdwg.mxu0
    %v275 = vmul.f32 %v272, 0.00390625
    %v276 = vadd.f32 %v275, 1e-05
    %v277 = vrsqrt.pop %v276
    %v278 = vmul.f32 %v65, %v277
    %v279 = vlaneseq
    %v280 = vshrl.u32 %v279, 7
    %v281 = vsub.s32 0, %v280
    %v282 = vrot.slane %v278, %v281
    %v283 = vmul.f32 %v141, %v282
    %v284 = vmul.f32 %v142, %v282
    %v285 = vmul.f32 %v143, %v282
    %v286 = vmul.f32 %v144, %v282
    %v287 = vmul.f32 %v145, %v282
    %v288 = vmul.f32 %v146, %v282
    %v289 = vmul.f32 %v147, %v282
    %v290 = vmul.f32 %v148, %v282
    %v291 = vmul.f32 %v149, %v282
    %v292 = vmul.f32 %v150, %v282
    %v293 = vmul.f32 %v151, %v282
    %v294 = vmul.f32 %v152, %v282
    %v295 = vmul.f32 %v153, %v282
    %v296 = vmul.f32 %v154, %v282
    %v297 = vmul.f32 %v155, %v282
    %v298 = vmul.f32 %v156, %v282
    %v299 = vmul.f32 %v157, %v282
    %v300 = vmul.f32 %v158, %v282
    %v301 = vmul.f32 %v159, %v282
    %v302 = vmul.f32 %v160, %v282
    %v303 = vmul.f32 %v161, %v282
    %v304 = vmul.f32 %v162, %v282
    %v305 = vmul.f32 %v163, %v282
    %v306 = vmul.f32 %v164, %v282
    %v307 = vmul.f32 %v165, %v282
    %v308 = vmul.f32 %v166, %v282
    %v309 = vmul.f32 %v167, %v282
    %v310 = vmul.f32 %v168, %v282
    %v311 = vmul.f32 %v169, %v282
    %v312 = vmul.f32 %v170, %v282
    %v313 = vmul.f32 %v171, %v282
    %v314 = vmul.f32 %v172, %v282
    %v315 = vlaneseq
    %v316 = vshrl.u32 %v315, 7
    %v317 = vsub.s32 1, %v316
    %v318 = vrot.slane %v65, %v317
    %v319 = vadd.f32 %v283, %v318
    %v320 = vadd.f32 %v284, %v318
    %v321 = vadd.f32 %v285, %v318
    %v322 = vadd.f32 %v286, %v318
    %v323 = vadd.f32 %v287, %v318
    %v324 = vadd.f32 %v288, %v318
    %v325 = vadd.f32 %v289, %v318
    %v326 = vadd.f32 %v290, %v318
    %v327 = vadd.f32 %v291, %v318
    %v328 = vadd.f32 %v292, %v318
    %v329 = vadd.f32 %v293, %v318
    %v330 = vadd.f32 %v294, %v318
    %v331 = vadd.f32 %v295, %v318
    %v332 = vadd.f32 %v296, %v318
    %v333 = vadd.f32 %v297, %v318
    %v334 = vadd.f32 %v298, %v318
    %v335 = vadd.f32 %v299, %v318
    %v336 = vadd.f32 %v300, %v318
    %v337 = vadd.f32 %v301, %v318
    %v338 = vadd.f32 %v302, %v318
    %v339 = vadd.f32 %v303, %v318
    %v340 = vadd.f32 %v304, %v318
    %v341 = vadd.f32 %v305, %v318
    %v342 = vadd.f32 %v306, %v318
    %v343 = vadd.f32 %v307, %v318
    %v344 = vadd.f32 %v308, %v318
    %v345 = vadd.f32 %v309, %v318
    %v346 = vadd.f32 %v310, %v318
    %v347 = vadd.f32 %v311, %v318
    %v348 = vadd.f32 %v312, %v318
    %v349 = vadd.f32 %v313, %v318
    %v350 = vadd.f32 %v314, %v318
    %v351 = vmax.f32 %v319, 0.0
    %v352 = vmax.f32 %v320, 0.0
    %v353 = vmax.f32 %v321, 0.0
    %v354 = vmax.f32 %v322, 0.0
    %v355 = vmax.f32 %v323, 0.0
    %v356 = vmax.f32 %v324, 0.0
    %v357 = vmax.f32 %v325, 0.0
    %v358 = vmax.f32 %v326, 0.0
    %v359 = vmax.f32 %v327, 0.0
    %v360 = vmax.f32 %v328, 0.0
    %v361 = vmax.f32 %v329, 0.0
    %v362 = vmax.f32 %v330, 0.0
    %v363 = vmax.f32 %v331, 0.0
    %v364 = vmax.f32 %v332, 0.0
    %v365 = vmax.f32 %v333, 0.0
    %v366 = vmax.f32 %v334, 0.0
    %v367 = vmax.f32 %v335, 0.0
    %v368 = vmax.f32 %v336, 0.0
    %v369 = vmax.f32 %v337, 0.0
    %v370 = vmax.f32 %v338, 0.0
    %v371 = vmax.f32 %v339, 0.0
    %v372 = vmax.f32 %v340, 0.0
    %v373 = vmax.f32 %v341, 0.0
    %v374 = vmax.f32 %v342, 0.0
    %v375 = vmax.f32 %v343, 0.0
    %v376 = vmax.f32 %v344, 0.0
    %v377 = vmax.f32 %v345, 0.0
    %v378 = vmax.f32 %v346, 0.0
    %v379 = vmax.f32 %v347, 0.0
    %v380 = vmax.f32 %v348, 0.0
    %v381 = vmax.f32 %v349, 0.0
    %v382 = vmax.f32 %v350, 0.0
    %v383 = vpack.c.bf16 %v352, %v351
    %v384 = vpack.c.bf16 %v354, %v353
    %v385 = vpack.c.bf16 %v356, %v355
    %v386 = vpack.c.bf16 %v358, %v357
    %v387 = vpack.c.bf16 %v360, %v359
    %v388 = vpack.c.bf16 %v362, %v361
    %v389 = vpack.c.bf16 %v364, %v363
    %v390 = vpack.c.bf16 %v366, %v365
    %v391 = vpack.c.bf16 %v368, %v367
    %v392 = vpack.c.bf16 %v370, %v369
    %v393 = vpack.c.bf16 %v372, %v371
    %v394 = vpack.c.bf16 %v374, %v373
    %v395 = vpack.c.bf16 %v376, %v375
    %v396 = vpack.c.bf16 %v378, %v377
    %v397 = vpack.c.bf16 %v380, %v379
    %v398 = vpack.c.bf16 %v382, %v381
    %v399 = vld [vmem:[%s2] sm:$0xf]
    %v400 = vld [vmem:[%s2 + $0x4] sm:$0xf]
    %v401 = vld [vmem:[%s2 + $0x8] sm:$0xf]
    %v402 = vld [vmem:[%s2 + $0xc] sm:$0xf]
    %v403 = vld [vmem:[%s2 + $0x10] sm:$0xf]
    %v404 = vld [vmem:[%s2 + $0x14] sm:$0xf]
    %v405 = vld [vmem:[%s2 + $0x18] sm:$0xf]
    %v406 = vld [vmem:[%s2 + $0x1c] sm:$0xf]
    %v407 = vld [vmem:[%s2 + $0x20] sm:$0xf]
    %v408 = vld [vmem:[%s2 + $0x24] sm:$0xf]
    %v409 = vld [vmem:[%s2 + $0x28] sm:$0xf]
    %v410 = vld [vmem:[%s2 + $0x2c] sm:$0xf]
    %v411 = vld [vmem:[%s2 + $0x30] sm:$0xf]
    %v412 = vld [vmem:[%s2 + $0x34] sm:$0xf]
    %v413 = vld [vmem:[%s2 + $0x38] sm:$0xf]
    %v414 = vld [vmem:[%s2 + $0x3c] sm:$0xf]
    %v415 = vlaneseq
    %v416 = vshrl.u32 %v415, 7
    %v417 = vsub.s32 3, %v416
    %v418 = vrot.slane %v65, %v417
    %v435 = vunpack.c.l.b16 %v399
    %v436 = vunpack.c.l.b16 %v400
    %v437 = vunpack.c.l.b16 %v401
    %v438 = vunpack.c.l.b16 %v402
    %v439 = vunpack.c.l.b16 %v403
    %v440 = vunpack.c.l.b16 %v404
    %v441 = vunpack.c.l.b16 %v405
    %v442 = vunpack.c.l.b16 %v406
    %v443 = vunpack.c.l.b16 %v407
    %v444 = vunpack.c.l.b16 %v408
    %v445 = vunpack.c.l.b16 %v409
    %v446 = vunpack.c.l.b16 %v410
    %v447 = vunpack.c.l.b16 %v411
    %v448 = vunpack.c.l.b16 %v412
    %v449 = vunpack.c.l.b16 %v413
    %v450 = vunpack.c.l.b16 %v414
    %v451 = vpack.c.b16 %v436, %v435
    %v452 = vpack.c.b16 %v438, %v437
    %v453 = vpack.c.b16 %v440, %v439
    %v454 = vpack.c.b16 %v442, %v441
    %v455 = vpack.c.b16 %v444, %v443
    %v456 = vpack.c.b16 %v446, %v445
    %v457 = vpack.c.b16 %v448, %v447
    %v458 = vpack.c.b16 %v450, %v449
    %467 = vmatprep.subr.bf16.mxu0 0
    %468 = vmatpush1.bf16.msra.mxu0 %v458
    %469 = vmatprep.subr.bf16.mxu0 0
    %470 = vmatpush1.bf16.msra.mxu0 %v457
    %471 = vmatprep.subr.bf16.mxu0 0
    %472 = vmatpush1.bf16.msra.mxu0 %v456
    %473 = vmatprep.subr.bf16.mxu0 0
    %474 = vmatpush1.bf16.msra.mxu0 %v455
    %475 = vmatprep.subr.bf16.mxu0 0
    %476 = vmatpush1.bf16.msra.mxu0 %v454
    %477 = vmatprep.subr.bf16.mxu0 0
    %478 = vmatpush1.bf16.msra.mxu0 %v453
    %479 = vmatprep.subr.bf16.mxu0 0
    %480 = vmatpush1.bf16.msra.mxu0 %v452
    %481 = vmatprep.subr.bf16.mxu0 0
    %482 = vmatpush1.bf16.msra.mxu0 %v451
    %483 = vmatprep.subr.bf16.mxu0 0
    %484 = vmatpush2.bf16.msra.mxu0 0
    %485 = vmatprep.subr.bf16.mxu0 0
    %486 = vmatpush2.bf16.msra.mxu0 0
    %487 = vmatprep.subr.bf16.mxu0 0
    %488 = vmatpush2.bf16.msra.mxu0 0
    %489 = vmatprep.subr.bf16.mxu0 0
    %490 = vmatpush2.bf16.msra.mxu0 0
    %491 = vmatprep.subr.bf16.mxu0 0
    %492 = vmatpush2.bf16.msra.mxu0 0
    %493 = vmatprep.subr.bf16.mxu0 0
    %494 = vmatpush2.bf16.msra.mxu0 0
    %495 = vmatprep.subr.bf16.mxu0 0
    %496 = vmatpush2.bf16.msra.mxu0 0
    %497 = vmatprep.subr.bf16.mxu0 0
    %498 = vmatpush2.bf16.msra.mxu0 0
    %499 = vmatprep.mubr.bf16.mxu0 0
    %500 = vmatmul.mubr.bf16.gmra.mxu0 %v383
    %v501 = vpop.f32.mrf.mxu0
    %v502 = vadd.f32 %v418, %v501
    %v503 = vpop.f32.mrf.mxu0
    %v504 = vpop.f32.mrf.mxu0
    %v505 = vadd.f32 %v418, %v504
    %v506 = vpop.f32.mrf.mxu0
    %507 = vmatprep.mubr.bf16.mxu0 0
    %508 = vmatmul.mubr.bf16.gmra.mxu0 %v384
    %v509 = vpop.f32.mrf.mxu0
    %v510 = vadd.f32 %v418, %v509
    %v511 = vpop.f32.mrf.mxu0
    %v512 = vpop.f32.mrf.mxu0
    %v513 = vadd.f32 %v418, %v512
    %v514 = vpop.f32.mrf.mxu0
    %515 = vmatprep.mubr.bf16.mxu0 0
    %516 = vmatmul.mubr.bf16.gmra.mxu0 %v385
    %v517 = vpop.f32.mrf.mxu0
    %v518 = vadd.f32 %v418, %v517
    %v519 = vpop.f32.mrf.mxu0
    %v520 = vpop.f32.mrf.mxu0
    %v521 = vadd.f32 %v418, %v520
    %v522 = vpop.f32.mrf.mxu0
    %523 = vmatprep.mubr.bf16.mxu0 0
    %524 = vmatmul.mubr.bf16.gmra.mxu0 %v386
    %v525 = vpop.f32.mrf.mxu0
    %v526 = vadd.f32 %v418, %v525
    %v527 = vpop.f32.mrf.mxu0
    %v528 = vpop.f32.mrf.mxu0
    %v529 = vadd.f32 %v418, %v528
    %v530 = vpop.f32.mrf.mxu0
    %531 = vmatprep.mubr.bf16.mxu0 0
    %532 = vmatmul.mubr.bf16.gmra.mxu0 %v387
    %v533 = vpop.f32.mrf.mxu0
    %v534 = vadd.f32 %v418, %v533
    %v535 = vpop.f32.mrf.mxu0
    %v536 = vpop.f32.mrf.mxu0
    %v537 = vadd.f32 %v418, %v536
    %v538 = vpop.f32.mrf.mxu0
    %539 = vmatprep.mubr.bf16.mxu0 0
    %540 = vmatmul.mubr.bf16.gmra.mxu0 %v388
    %v541 = vpop.f32.mrf.mxu0
    %v542 = vadd.f32 %v418, %v541
    %v543 = vpop.f32.mrf.mxu0
    %v544 = vpop.f32.mrf.mxu0
    %v545 = vadd.f32 %v418, %v544
    %v546 = vpop.f32.mrf.mxu0
    %547 = vmatprep.mubr.bf16.mxu0 0
    %548 = vmatmul.mubr.bf16.gmra.mxu0 %v389
    %v549 = vpop.f32.mrf.mxu0
    %v550 = vadd.f32 %v418, %v549
    %v551 = vpop.f32.mrf.mxu0
    %v552 = vpop.f32.mrf.mxu0
    %v553 = vadd.f32 %v418, %v552
    %v554 = vpop.f32.mrf.mxu0
    %555 = vmatprep.mubr.bf16.mxu0 0
    %556 = vmatmul.mubr.bf16.gmra.mxu0 %v390
    %v557 = vpop.f32.mrf.mxu0
    %v558 = vadd.f32 %v418, %v557
    %v559 = vpop.f32.mrf.mxu0
    %v560 = vpop.f32.mrf.mxu0
    %v561 = vadd.f32 %v418, %v560
    %v562 = vpop.f32.mrf.mxu0
    %563 = vmatprep.mubr.bf16.mxu0 0
    %564 = vmatmul.mubr.bf16.gmra.mxu0 %v391
    %v565 = vpop.f32.mrf.mxu0
    %v566 = vadd.f32 %v418, %v565
    %v567 = vpop.f32.mrf.mxu0
    %v568 = vpop.f32.mrf.mxu0
    %v569 = vadd.f32 %v418, %v568
    %v570 = vpop.f32.mrf.mxu0
    %571 = vmatprep.mubr.bf16.mxu0 0
    %572 = vmatmul.mubr.bf16.gmra.mxu0 %v392
    %v573 = vpop.f32.mrf.mxu0
    %v574 = vadd.f32 %v418, %v573
    %v575 = vpop.f32.mrf.mxu0
    %v576 = vpop.f32.mrf.mxu0
    %v577 = vadd.f32 %v418, %v576
    %v578 = vpop.f32.mrf.mxu0
    %579 = vmatprep.mubr.bf16.mxu0 0
    %580 = vmatmul.mubr.bf16.gmra.mxu0 %v393
    %v581 = vpop.f32.mrf.mxu0
    %v582 = vadd.f32 %v418, %v581
    %v583 = vpop.f32.mrf.mxu0
    %v584 = vpop.f32.mrf.mxu0
    %v585 = vadd.f32 %v418, %v584
    %v586 = vpop.f32.mrf.mxu0
    %587 = vmatprep.mubr.bf16.mxu0 0
    %588 = vmatmul.mubr.bf16.gmra.mxu0 %v394
    %v589 = vpop.f32.mrf.mxu0
    %v590 = vadd.f32 %v418, %v589
    %v591 = vpop.f32.mrf.mxu0
    %v592 = vpop.f32.mrf.mxu0
    %v593 = vadd.f32 %v418, %v592
    %v594 = vpop.f32.mrf.mxu0
    %595 = vmatprep.mubr.bf16.mxu0 0
    %596 = vmatmul.mubr.bf16.gmra.mxu0 %v395
    %v597 = vpop.f32.mrf.mxu0
    %v598 = vadd.f32 %v418, %v597
    %v599 = vpop.f32.mrf.mxu0
    %v600 = vpop.f32.mrf.mxu0
    %v601 = vadd.f32 %v418, %v600
    %v602 = vpop.f32.mrf.mxu0
    %603 = vmatprep.mubr.bf16.mxu0 0
    %604 = vmatmul.mubr.bf16.gmra.mxu0 %v396
    %v605 = vpop.f32.mrf.mxu0
    %v606 = vadd.f32 %v418, %v605
    %v607 = vpop.f32.mrf.mxu0
    %v608 = vpop.f32.mrf.mxu0
    %v609 = vadd.f32 %v418, %v608
    %v610 = vpop.f32.mrf.mxu0
    %611 = vmatprep.mubr.bf16.mxu0 0
    %612 = vmatmul.mubr.bf16.gmra.mxu0 %v397
    %v613 = vpop.f32.mrf.mxu0
    %v614 = vadd.f32 %v418, %v613
    %v615 = vpop.f32.mrf.mxu0
    %v616 = vpop.f32.mrf.mxu0
    %v617 = vadd.f32 %v418, %v616
    %v618 = vpop.f32.mrf.mxu0
    %619 = vmatprep.mubr.bf16.mxu0 0
    %620 = vmatmul.mubr.bf16.gmra.mxu0 %v398
    %v621 = vpop.f32.mrf.mxu0
    %v622 = vadd.f32 %v418, %v621
    %v623 = vpop.f32.mrf.mxu0
    %v624 = vpop.f32.mrf.mxu0
    %v625 = vadd.f32 %v418, %v624
    %v626 = vpop.f32.mrf.mxu0
    %627 = vdwg.mxu0
    %v628 = vmax.f32 %v502, 0.0
    %v629 = vmax.f32 %v505, 0.0
    %v630 = vmax.f32 %v510, 0.0
    %v631 = vmax.f32 %v513, 0.0
    %v632 = vmax.f32 %v518, 0.0
    %v633 = vmax.f32 %v521, 0.0
    %v634 = vmax.f32 %v526, 0.0
    %v635 = vmax.f32 %v529, 0.0
    %v636 = vmax.f32 %v534, 0.0
    %v637 = vmax.f32 %v537, 0.0
    %v638 = vmax.f32 %v542, 0.0
    %v639 = vmax.f32 %v545, 0.0
    %v640 = vmax.f32 %v550, 0.0
    %v641 = vmax.f32 %v553, 0.0
    %v642 = vmax.f32 %v558, 0.0
    %v643 = vmax.f32 %v561, 0.0
    %v644 = vmax.f32 %v566, 0.0
    %v645 = vmax.f32 %v569, 0.0
    %v646 = vmax.f32 %v574, 0.0
    %v647 = vmax.f32 %v577, 0.0
    %v648 = vmax.f32 %v582, 0.0
    %v649 = vmax.f32 %v585, 0.0
    %v650 = vmax.f32 %v590, 0.0
    %v651 = vmax.f32 %v593, 0.0
    %v652 = vmax.f32 %v598, 0.0
    %v653 = vmax.f32 %v601, 0.0
    %v654 = vmax.f32 %v606, 0.0
    %v655 = vmax.f32 %v609, 0.0
    %v656 = vmax.f32 %v614, 0.0
    %v657 = vmax.f32 %v617, 0.0
    %v658 = vmax.f32 %v622, 0.0
    %v659 = vmax.f32 %v625, 0.0
    %660 = vmatprep.subr.mxu0 0.0
    %661 = vmatpush1.msra.mxu0 %v643
    %662 = vmatprep.subr.mxu0 0.0
    %663 = vmatpush1.msra.mxu0 %v642
    %664 = vmatprep.subr.mxu0 0.0
    %665 = vmatpush1.msra.mxu0 %v641
    %666 = vmatprep.subr.mxu0 0.0
    %667 = vmatpush1.msra.mxu0 %v640
    %668 = vmatprep.subr.mxu0 0.0
    %669 = vmatpush1.msra.mxu0 %v639
    %670 = vmatprep.subr.mxu0 0.0
    %671 = vmatpush1.msra.mxu0 %v638
    %672 = vmatprep.subr.mxu0 0.0
    %673 = vmatpush1.msra.mxu0 %v637
    %674 = vmatprep.subr.mxu0 0.0
    %675 = vmatpush1.msra.mxu0 %v636
    %676 = vmatprep.subr.mxu0 0.0
    %677 = vmatpush1.msra.mxu0 %v635
    %678 = vmatprep.subr.mxu0 0.0
    %679 = vmatpush1.msra.mxu0 %v634
    %680 = vmatprep.subr.mxu0 0.0
    %681 = vmatpush1.msra.mxu0 %v633
    %682 = vmatprep.subr.mxu0 0.0
    %683 = vmatpush1.msra.mxu0 %v632
    %684 = vmatprep.subr.mxu0 0.0
    %685 = vmatpush1.msra.mxu0 %v631
    %686 = vmatprep.subr.mxu0 0.0
    %687 = vmatpush1.msra.mxu0 %v630
    %688 = vmatprep.subr.mxu0 0.0
    %689 = vmatpush1.msra.mxu0 %v629
    %690 = vmatprep.subr.mxu0 0.0
    %691 = vmatpush1.msra.mxu0 %v628
    %692 = vmatprep.subr.mxu0 0.0
    %693 = vmatpush2.msra.mxu0 %v659
    %694 = vmatprep.subr.mxu0 0.0
    %695 = vmatpush2.msra.mxu0 %v658
    %696 = vmatprep.subr.mxu0 0.0
    %697 = vmatpush2.msra.mxu0 %v657
    %698 = vmatprep.subr.mxu0 0.0
    %699 = vmatpush2.msra.mxu0 %v656
    %700 = vmatprep.subr.mxu0 0.0
    %701 = vmatpush2.msra.mxu0 %v655
    %702 = vmatprep.subr.mxu0 0.0
    %703 = vmatpush2.msra.mxu0 %v654
    %704 = vmatprep.subr.mxu0 0.0
    %705 = vmatpush2.msra.mxu0 %v653
    %706 = vmatprep.subr.mxu0 0.0
    %707 = vmatpush2.msra.mxu0 %v652
    %708 = vmatprep.subr.mxu0 0.0
    %709 = vmatpush2.msra.mxu0 %v651
    %710 = vmatprep.subr.mxu0 0.0
    %711 = vmatpush2.msra.mxu0 %v650
    %712 = vmatprep.subr.mxu0 0.0
    %713 = vmatpush2.msra.mxu0 %v649
    %714 = vmatprep.subr.mxu0 0.0
    %715 = vmatpush2.msra.mxu0 %v648
    %716 = vmatprep.subr.mxu0 0.0
    %717 = vmatpush2.msra.mxu0 %v647
    %718 = vmatprep.subr.mxu0 0.0
    %719 = vmatpush2.msra.mxu0 %v646
    %720 = vmatprep.subr.mxu0 0.0
    %721 = vmatpush2.msra.mxu0 %v645
    %722 = vmatprep.subr.mxu0 0.0
    %723 = vmatpush2.msra.mxu0 %v644
    %724 = vmatprep.mubr.f32.mxu0 1.0
    %725 = vmatmul.mubr.f32.gmra.mxu0 1.0
    %v726 = vpop.f32.mrf.mxu0
    %v727 = vadd.f32 0.0, %v726
    %v728 = vpop.f32.mrf.mxu0
    %729 = vdwg.mxu0
    %v730 = vmul.f32 %v727, 0.00390625
    %v731 = vlaneseq
    %v732 = vshrl.u32 %v731, 7
    %v733 = vsub.s32 0, %v732
    %v734 = vrot.slane %v730, %v733
    %v735 = vsub.f32 %v628, %v734
    %v736 = vsub.f32 %v629, %v734
    %v737 = vsub.f32 %v630, %v734
    %v738 = vsub.f32 %v631, %v734
    %v739 = vsub.f32 %v632, %v734
    %v740 = vsub.f32 %v633, %v734
    %v741 = vsub.f32 %v634, %v734
    %v742 = vsub.f32 %v635, %v734
    %v743 = vsub.f32 %v636, %v734
    %v744 = vsub.f32 %v637, %v734
    %v745 = vsub.f32 %v638, %v734
    %v746 = vsub.f32 %v639, %v734
    %v747 = vsub.f32 %v640, %v734
    %v748 = vsub.f32 %v641, %v734
    %v749 = vsub.f32 %v642, %v734
    %v750 = vsub.f32 %v643, %v734
    %v751 = vsub.f32 %v644, %v734
    %v752 = vsub.f32 %v645, %v734
    %v753 = vsub.f32 %v646, %v734
    %v754 = vsub.f32 %v647, %v734
    %v755 = vsub.f32 %v648, %v734
    %v756 = vsub.f32 %v649, %v734
    %v757 = vsub.f32 %v650, %v734
    %v758 = vsub.f32 %v651, %v734
    %v759 = vsub.f32 %v652, %v734
    %v760 = vsub.f32 %v653, %v734
    %v761 = vsub.f32 %v654, %v734
    %v762 = vsub.f32 %v655, %v734
    %v763 = vsub.f32 %v656, %v734
    %v764 = vsub.f32 %v657, %v734
    %v765 = vsub.f32 %v658, %v734
    %v766 = vsub.f32 %v659, %v734
    %v767 = vmul.f32 %v735, %v735
    %v768 = vmul.f32 %v736, %v736
    %v769 = vmul.f32 %v737, %v737
    %v770 = vmul.f32 %v738, %v738
    %v771 = vmul.f32 %v739, %v739
    %v772 = vmul.f32 %v740, %v740
    %v773 = vmul.f32 %v741, %v741
    %v774 = vmul.f32 %v742, %v742
    %v775 = vmul.f32 %v743, %v743
    %v776 = vmul.f32 %v744, %v744
    %v777 = vmul.f32 %v745, %v745
    %v778 = vmul.f32 %v746, %v746
    %v779 = vmul.f32 %v747, %v747
    %v780 = vmul.f32 %v748, %v748
    %v781 = vmul.f32 %v749, %v749
    %v782 = vmul.f32 %v750, %v750
    %v783 = vmul.f32 %v751, %v751
    %v784 = vmul.f32 %v752, %v752
    %v785 = vmul.f32 %v753, %v753
    %v786 = vmul.f32 %v754, %v754
    %v787 = vmul.f32 %v755, %v755
    %v788 = vmul.f32 %v756, %v756
    %v789 = vmul.f32 %v757, %v757
    %v790 = vmul.f32 %v758, %v758
    %v791 = vmul.f32 %v759, %v759
    %v792 = vmul.f32 %v760, %v760
    %v793 = vmul.f32 %v761, %v761
    %v794 = vmul.f32 %v762, %v762
    %v795 = vmul.f32 %v763, %v763
    %v796 = vmul.f32 %v764, %v764
    %v797 = vmul.f32 %v765, %v765
    %v798 = vmul.f32 %v766, %v766
    %799 = vmatprep.subr.mxu0 0.0
    %800 = vmatpush1.msra.mxu0 %v782
    %801 = vmatprep.subr.mxu0 0.0
    %802 = vmatpush1.msra.mxu0 %v781
    %803 = vmatprep.subr.mxu0 0.0
    %804 = vmatpush1.msra.mxu0 %v780
    %805 = vmatprep.subr.mxu0 0.0
    %806 = vmatpush1.msra.mxu0 %v779
    %807 = vmatprep.subr.mxu0 0.0
    %808 = vmatpush1.msra.mxu0 %v778
    %809 = vmatprep.subr.mxu0 0.0
    %810 = vmatpush1.msra.mxu0 %v777
    %811 = vmatprep.subr.mxu0 0.0
    %812 = vmatpush1.msra.mxu0 %v776
    %813 = vmatprep.subr.mxu0 0.0
    %814 = vmatpush1.msra.mxu0 %v775
    %815 = vmatprep.subr.mxu0 0.0
    %816 = vmatpush1.msra.mxu0 %v774
    %817 = vmatprep.subr.mxu0 0.0
    %818 = vmatpush1.msra.mxu0 %v773
    %819 = vmatprep.subr.mxu0 0.0
    %820 = vmatpush1.msra.mxu0 %v772
    %821 = vmatprep.subr.mxu0 0.0
    %822 = vmatpush1.msra.mxu0 %v771
    %823 = vmatprep.subr.mxu0 0.0
    %824 = vmatpush1.msra.mxu0 %v770
    %825 = vmatprep.subr.mxu0 0.0
    %826 = vmatpush1.msra.mxu0 %v769
    %827 = vmatprep.subr.mxu0 0.0
    %828 = vmatpush1.msra.mxu0 %v768
    %829 = vmatprep.subr.mxu0 0.0
    %830 = vmatpush1.msra.mxu0 %v767
    %831 = vmatprep.subr.mxu0 0.0
    %832 = vmatpush2.msra.mxu0 %v798
    %833 = vmatprep.subr.mxu0 0.0
    %834 = vmatpush2.msra.mxu0 %v797
    %835 = vmatprep.subr.mxu0 0.0
    %836 = vmatpush2.msra.mxu0 %v796
    %837 = vmatprep.subr.mxu0 0.0
    %838 = vmatpush2.msra.mxu0 %v795
    %839 = vmatprep.subr.mxu0 0.0
    %840 = vmatpush2.msra.mxu0 %v794
    %841 = vmatprep.subr.mxu0 0.0
    %842 = vmatpush2.msra.mxu0 %v793
    %843 = vmatprep.subr.mxu0 0.0
    %844 = vmatpush2.msra.mxu0 %v792
    %845 = vmatprep.subr.mxu0 0.0
    %846 = vmatpush2.msra.mxu0 %v791
    %847 = vmatprep.subr.mxu0 0.0
    %848 = vmatpush2.msra.mxu0 %v790
    %849 = vmatprep.subr.mxu0 0.0
    %850 = vmatpush2.msra.mxu0 %v789
    %851 = vmatprep.subr.mxu0 0.0
    %852 = vmatpush2.msra.mxu0 %v788
    %853 = vmatprep.subr.mxu0 0.0
    %854 = vmatpush2.msra.mxu0 %v787
    %855 = vmatprep.subr.mxu0 0.0
    %856 = vmatpush2.msra.mxu0 %v786
    %857 = vmatprep.subr.mxu0 0.0
    %858 = vmatpush2.msra.mxu0 %v785
    %859 = vmatprep.subr.mxu0 0.0
    %860 = vmatpush2.msra.mxu0 %v784
    %861 = vmatprep.subr.mxu0 0.0
    %862 = vmatpush2.msra.mxu0 %v783
    %863 = vmatprep.mubr.f32.mxu0 1.0
    %864 = vmatmul.mubr.f32.gmra.mxu0 1.0
    %v865 = vpop.f32.mrf.mxu0
    %v866 = vadd.f32 0.0, %v865
    %v867 = vpop.f32.mrf.mxu0
    %868 = vdwg.mxu0
    %v869 = vmul.f32 %v866, 0.00390625
    %v870 = vadd.f32 %v869, 1e-05
    %v871 = vrsqrt.pop %v870
    %v873 = vrot.slane %v871, 4
    %v875 = vmul.f32 %v65, %v873
    %v876 = vlaneseq
    %v877 = vshrl.u32 %v876, 7
    %v878 = vsub.s32 4, %v877
    %v879 = vrot.slane %v875, %v878
    %v880 = vmul.f32 %v735, %v879
    %v881 = vmul.f32 %v736, %v879
    %v882 = vmul.f32 %v737, %v879
    %v883 = vmul.f32 %v738, %v879
    %v884 = vmul.f32 %v739, %v879
    %v885 = vmul.f32 %v740, %v879
    %v886 = vmul.f32 %v741, %v879
    %v887 = vmul.f32 %v742, %v879
    %v888 = vmul.f32 %v743, %v879
    %v889 = vmul.f32 %v744, %v879
    %v890 = vmul.f32 %v745, %v879
    %v891 = vmul.f32 %v746, %v879
    %v892 = vmul.f32 %v747, %v879
    %v893 = vmul.f32 %v748, %v879
    %v894 = vmul.f32 %v749, %v879
    %v895 = vmul.f32 %v750, %v879
    %v896 = vmul.f32 %v751, %v879
    %v897 = vmul.f32 %v752, %v879
    %v898 = vmul.f32 %v753, %v879
    %v899 = vmul.f32 %v754, %v879
    %v900 = vmul.f32 %v755, %v879
    %v901 = vmul.f32 %v756, %v879
    %v902 = vmul.f32 %v757, %v879
    %v903 = vmul.f32 %v758, %v879
    %v904 = vmul.f32 %v759, %v879
    %v905 = vmul.f32 %v760, %v879
    %v906 = vmul.f32 %v761, %v879
    %v907 = vmul.f32 %v762, %v879
    %v908 = vmul.f32 %v763, %v879
    %v909 = vmul.f32 %v764, %v879
    %v910 = vmul.f32 %v765, %v879
    %v911 = vmul.f32 %v766, %v879
    %v912 = vlaneseq
    %v913 = vshrl.u32 %v912, 7
    %v914 = vsub.s32 5, %v913
    %v915 = vrot.slane %v65, %v914
    %v916 = vadd.f32 %v880, %v915
    %v917 = vadd.f32 %v881, %v915
    %v918 = vadd.f32 %v882, %v915
    %v919 = vadd.f32 %v883, %v915
    %v920 = vadd.f32 %v884, %v915
    %v921 = vadd.f32 %v885, %v915
    %v922 = vadd.f32 %v886, %v915
    %v923 = vadd.f32 %v887, %v915
    %v924 = vadd.f32 %v888, %v915
    %v925 = vadd.f32 %v889, %v915
    %v926 = vadd.f32 %v890, %v915
    %v927 = vadd.f32 %v891, %v915
    %v928 = vadd.f32 %v892, %v915
    %v929 = vadd.f32 %v893, %v915
    %v930 = vadd.f32 %v894, %v915
    %v931 = vadd.f32 %v895, %v915
    %v932 = vadd.f32 %v896, %v915
    %v933 = vadd.f32 %v897, %v915
    %v934 = vadd.f32 %v898, %v915
    %v935 = vadd.f32 %v899, %v915
    %v936 = vadd.f32 %v900, %v915
    %v937 = vadd.f32 %v901, %v915
    %v938 = vadd.f32 %v902, %v915
    %v939 = vadd.f32 %v903, %v915
    %v940 = vadd.f32 %v904, %v915
    %v941 = vadd.f32 %v905, %v915
    %v942 = vadd.f32 %v906, %v915
    %v943 = vadd.f32 %v907, %v915
    %v944 = vadd.f32 %v908, %v915
    %v945 = vadd.f32 %v909, %v915
    %v946 = vadd.f32 %v910, %v915
    %v947 = vadd.f32 %v911, %v915
    %v948 = vmax.f32 %v916, 0.0
    %v949 = vmax.f32 %v917, 0.0
    %v950 = vmax.f32 %v918, 0.0
    %v951 = vmax.f32 %v919, 0.0
    %v952 = vmax.f32 %v920, 0.0
    %v953 = vmax.f32 %v921, 0.0
    %v954 = vmax.f32 %v922, 0.0
    %v955 = vmax.f32 %v923, 0.0
    %v956 = vmax.f32 %v924, 0.0
    %v957 = vmax.f32 %v925, 0.0
    %v958 = vmax.f32 %v926, 0.0
    %v959 = vmax.f32 %v927, 0.0
    %v960 = vmax.f32 %v928, 0.0
    %v961 = vmax.f32 %v929, 0.0
    %v962 = vmax.f32 %v930, 0.0
    %v963 = vmax.f32 %v931, 0.0
    %v964 = vmax.f32 %v932, 0.0
    %v965 = vmax.f32 %v933, 0.0
    %v966 = vmax.f32 %v934, 0.0
    %v967 = vmax.f32 %v935, 0.0
    %v968 = vmax.f32 %v936, 0.0
    %v969 = vmax.f32 %v937, 0.0
    %v970 = vmax.f32 %v938, 0.0
    %v971 = vmax.f32 %v939, 0.0
    %v972 = vmax.f32 %v940, 0.0
    %v973 = vmax.f32 %v941, 0.0
    %v974 = vmax.f32 %v942, 0.0
    %v975 = vmax.f32 %v943, 0.0
    %v976 = vmax.f32 %v944, 0.0
    %v977 = vmax.f32 %v945, 0.0
    %v978 = vmax.f32 %v946, 0.0
    %v979 = vmax.f32 %v947, 0.0
    %v980 = vpack.c.bf16 %v949, %v948
    %v981 = vpack.c.bf16 %v951, %v950
    %v982 = vpack.c.bf16 %v953, %v952
    %v983 = vpack.c.bf16 %v955, %v954
    %v984 = vpack.c.bf16 %v957, %v956
    %v985 = vpack.c.bf16 %v959, %v958
    %v986 = vpack.c.bf16 %v961, %v960
    %v987 = vpack.c.bf16 %v963, %v962
    %v988 = vpack.c.bf16 %v965, %v964
    %v989 = vpack.c.bf16 %v967, %v966
    %v990 = vpack.c.bf16 %v969, %v968
    %v991 = vpack.c.bf16 %v971, %v970
    %v992 = vpack.c.bf16 %v973, %v972
    %v993 = vpack.c.bf16 %v975, %v974
    %v994 = vpack.c.bf16 %v977, %v976
    %v995 = vpack.c.bf16 %v979, %v978
    %v996 = vld [vmem:[%s3] sm:$0xf]
    %v997 = vld [vmem:[%s3 + $0x4] sm:$0xf]
    %v998 = vld [vmem:[%s3 + $0x8] sm:$0xf]
    %v999 = vld [vmem:[%s3 + $0xc] sm:$0xf]
    %v1000 = vld [vmem:[%s3 + $0x10] sm:$0xf]
    %v1001 = vld [vmem:[%s3 + $0x14] sm:$0xf]
    %v1002 = vld [vmem:[%s3 + $0x18] sm:$0xf]
    %v1003 = vld [vmem:[%s3 + $0x1c] sm:$0xf]
    %v1004 = vld [vmem:[%s3 + $0x20] sm:$0xf]
    %v1005 = vld [vmem:[%s3 + $0x24] sm:$0xf]
    %v1006 = vld [vmem:[%s3 + $0x28] sm:$0xf]
    %v1007 = vld [vmem:[%s3 + $0x2c] sm:$0xf]
    %v1008 = vld [vmem:[%s3 + $0x30] sm:$0xf]
    %v1009 = vld [vmem:[%s3 + $0x34] sm:$0xf]
    %v1010 = vld [vmem:[%s3 + $0x38] sm:$0xf]
    %v1011 = vld [vmem:[%s3 + $0x3c] sm:$0xf]
    %v1012 = vlaneseq
    %v1013 = vshrl.u32 %v1012, 7
    %v1014 = vsub.s32 2, %v1013
    %v1015 = vrot.slane %v65, %v1014
    %v1032 = vunpack.c.l.b16 %v996
    %v1033 = vunpack.c.l.b16 %v997
    %v1034 = vunpack.c.l.b16 %v998
    %v1035 = vunpack.c.l.b16 %v999
    %v1036 = vunpack.c.l.b16 %v1000
    %v1037 = vunpack.c.l.b16 %v1001
    %v1038 = vunpack.c.l.b16 %v1002
    %v1039 = vunpack.c.l.b16 %v1003
    %v1040 = vunpack.c.l.b16 %v1004
    %v1041 = vunpack.c.l.b16 %v1005
    %v1042 = vunpack.c.l.b16 %v1006
    %v1043 = vunpack.c.l.b16 %v1007
    %v1044 = vunpack.c.l.b16 %v1008
    %v1045 = vunpack.c.l.b16 %v1009
    %v1046 = vunpack.c.l.b16 %v1010
    %v1047 = vunpack.c.l.b16 %v1011
    %v1048 = vpack.c.b16 %v1033, %v1032
    %v1049 = vpack.c.b16 %v1035, %v1034
    %v1050 = vpack.c.b16 %v1037, %v1036
    %v1051 = vpack.c.b16 %v1039, %v1038
    %v1052 = vpack.c.b16 %v1041, %v1040
    %v1053 = vpack.c.b16 %v1043, %v1042
    %v1054 = vpack.c.b16 %v1045, %v1044
    %v1055 = vpack.c.b16 %v1047, %v1046
    %1064 = vmatprep.subr.bf16.mxu0 0
    %1065 = vmatpush1.bf16.msra.mxu0 %v1055
    %1066 = vmatprep.subr.bf16.mxu0 0
    %1067 = vmatpush1.bf16.msra.mxu0 %v1054
    %1068 = vmatprep.subr.bf16.mxu0 0
    %1069 = vmatpush1.bf16.msra.mxu0 %v1053
    %1070 = vmatprep.subr.bf16.mxu0 0
    %1071 = vmatpush1.bf16.msra.mxu0 %v1052
    %1072 = vmatprep.subr.bf16.mxu0 0
    %1073 = vmatpush1.bf16.msra.mxu0 %v1051
    %1074 = vmatprep.subr.bf16.mxu0 0
    %1075 = vmatpush1.bf16.msra.mxu0 %v1050
    %1076 = vmatprep.subr.bf16.mxu0 0
    %1077 = vmatpush1.bf16.msra.mxu0 %v1049
    %1078 = vmatprep.subr.bf16.mxu0 0
    %1079 = vmatpush1.bf16.msra.mxu0 %v1048
    %1080 = vmatprep.subr.bf16.mxu0 0
    %1081 = vmatpush2.bf16.msra.mxu0 0
    %1082 = vmatprep.subr.bf16.mxu0 0
    %1083 = vmatpush2.bf16.msra.mxu0 0
    %1084 = vmatprep.subr.bf16.mxu0 0
    %1085 = vmatpush2.bf16.msra.mxu0 0
    %1086 = vmatprep.subr.bf16.mxu0 0
    %1087 = vmatpush2.bf16.msra.mxu0 0
    %1088 = vmatprep.subr.bf16.mxu0 0
    %1089 = vmatpush2.bf16.msra.mxu0 0
    %1090 = vmatprep.subr.bf16.mxu0 0
    %1091 = vmatpush2.bf16.msra.mxu0 0
    %1092 = vmatprep.subr.bf16.mxu0 0
    %1093 = vmatpush2.bf16.msra.mxu0 0
    %1094 = vmatprep.subr.bf16.mxu0 0
    %1095 = vmatpush2.bf16.msra.mxu0 0
    %1096 = vmatprep.mubr.bf16.mxu0 0
    %1097 = vmatmul.mubr.bf16.gmra.mxu0 %v980
    %v1098 = vpop.f32.mrf.mxu0
    %v1099 = vadd.f32 %v1015, %v1098
    %v1100 = vpop.f32.mrf.mxu0
    %v1101 = vpop.f32.mrf.mxu0
    %v1102 = vadd.f32 %v1015, %v1101
    %v1103 = vpop.f32.mrf.mxu0
    %1104 = vmatprep.mubr.bf16.mxu0 0
    %1105 = vmatmul.mubr.bf16.gmra.mxu0 %v981
    %v1106 = vpop.f32.mrf.mxu0
    %v1107 = vadd.f32 %v1015, %v1106
    %v1108 = vpop.f32.mrf.mxu0
    %v1109 = vpop.f32.mrf.mxu0
    %v1110 = vadd.f32 %v1015, %v1109
    %v1111 = vpop.f32.mrf.mxu0
    %1112 = vmatprep.mubr.bf16.mxu0 0
    %1113 = vmatmul.mubr.bf16.gmra.mxu0 %v982
    %v1114 = vpop.f32.mrf.mxu0
    %v1115 = vadd.f32 %v1015, %v1114
    %v1116 = vpop.f32.mrf.mxu0
    %v1117 = vpop.f32.mrf.mxu0
    %v1118 = vadd.f32 %v1015, %v1117
    %v1119 = vpop.f32.mrf.mxu0
    %1120 = vmatprep.mubr.bf16.mxu0 0
    %1121 = vmatmul.mubr.bf16.gmra.mxu0 %v983
    %v1122 = vpop.f32.mrf.mxu0
    %v1123 = vadd.f32 %v1015, %v1122
    %v1124 = vpop.f32.mrf.mxu0
    %v1125 = vpop.f32.mrf.mxu0
    %v1126 = vadd.f32 %v1015, %v1125
    %v1127 = vpop.f32.mrf.mxu0
    %1128 = vmatprep.mubr.bf16.mxu0 0
    %1129 = vmatmul.mubr.bf16.gmra.mxu0 %v984
    %v1130 = vpop.f32.mrf.mxu0
    %v1131 = vadd.f32 %v1015, %v1130
    %v1132 = vpop.f32.mrf.mxu0
    %v1133 = vpop.f32.mrf.mxu0
    %v1134 = vadd.f32 %v1015, %v1133
    %v1135 = vpop.f32.mrf.mxu0
    %1136 = vmatprep.mubr.bf16.mxu0 0
    %1137 = vmatmul.mubr.bf16.gmra.mxu0 %v985
    %v1138 = vpop.f32.mrf.mxu0
    %v1139 = vadd.f32 %v1015, %v1138
    %v1140 = vpop.f32.mrf.mxu0
    %v1141 = vpop.f32.mrf.mxu0
    %v1142 = vadd.f32 %v1015, %v1141
    %v1143 = vpop.f32.mrf.mxu0
    %1144 = vmatprep.mubr.bf16.mxu0 0
    %1145 = vmatmul.mubr.bf16.gmra.mxu0 %v986
    %v1146 = vpop.f32.mrf.mxu0
    %v1147 = vadd.f32 %v1015, %v1146
    %v1148 = vpop.f32.mrf.mxu0
    %v1149 = vpop.f32.mrf.mxu0
    %v1150 = vadd.f32 %v1015, %v1149
    %v1151 = vpop.f32.mrf.mxu0
    %1152 = vmatprep.mubr.bf16.mxu0 0
    %1153 = vmatmul.mubr.bf16.gmra.mxu0 %v987
    %v1154 = vpop.f32.mrf.mxu0
    %v1155 = vadd.f32 %v1015, %v1154
    %v1156 = vpop.f32.mrf.mxu0
    %v1157 = vpop.f32.mrf.mxu0
    %v1158 = vadd.f32 %v1015, %v1157
    %v1159 = vpop.f32.mrf.mxu0
    %1160 = vmatprep.mubr.bf16.mxu0 0
    %1161 = vmatmul.mubr.bf16.gmra.mxu0 %v988
    %v1162 = vpop.f32.mrf.mxu0
    %v1163 = vadd.f32 %v1015, %v1162
    %v1164 = vpop.f32.mrf.mxu0
    %v1165 = vpop.f32.mrf.mxu0
    %v1166 = vadd.f32 %v1015, %v1165
    %v1167 = vpop.f32.mrf.mxu0
    %1168 = vmatprep.mubr.bf16.mxu0 0
    %1169 = vmatmul.mubr.bf16.gmra.mxu0 %v989
    %v1170 = vpop.f32.mrf.mxu0
    %v1171 = vadd.f32 %v1015, %v1170
    %v1172 = vpop.f32.mrf.mxu0
    %v1173 = vpop.f32.mrf.mxu0
    %v1174 = vadd.f32 %v1015, %v1173
    %v1175 = vpop.f32.mrf.mxu0
    %1176 = vmatprep.mubr.bf16.mxu0 0
    %1177 = vmatmul.mubr.bf16.gmra.mxu0 %v990
    %v1178 = vpop.f32.mrf.mxu0
    %v1179 = vadd.f32 %v1015, %v1178
    %v1180 = vpop.f32.mrf.mxu0
    %v1181 = vpop.f32.mrf.mxu0
    %v1182 = vadd.f32 %v1015, %v1181
    %v1183 = vpop.f32.mrf.mxu0
    %1184 = vmatprep.mubr.bf16.mxu0 0
    %1185 = vmatmul.mubr.bf16.gmra.mxu0 %v991
    %v1186 = vpop.f32.mrf.mxu0
    %v1187 = vadd.f32 %v1015, %v1186
    %v1188 = vpop.f32.mrf.mxu0
    %v1189 = vpop.f32.mrf.mxu0
    %v1190 = vadd.f32 %v1015, %v1189
    %v1191 = vpop.f32.mrf.mxu0
    %1192 = vmatprep.mubr.bf16.mxu0 0
    %1193 = vmatmul.mubr.bf16.gmra.mxu0 %v992
    %v1194 = vpop.f32.mrf.mxu0
    %v1195 = vadd.f32 %v1015, %v1194
    %v1196 = vpop.f32.mrf.mxu0
    %v1197 = vpop.f32.mrf.mxu0
    %v1198 = vadd.f32 %v1015, %v1197
    %v1199 = vpop.f32.mrf.mxu0
    %1200 = vmatprep.mubr.bf16.mxu0 0
    %1201 = vmatmul.mubr.bf16.gmra.mxu0 %v993
    %v1202 = vpop.f32.mrf.mxu0
    %v1203 = vadd.f32 %v1015, %v1202
    %v1204 = vpop.f32.mrf.mxu0
    %v1205 = vpop.f32.mrf.mxu0
    %v1206 = vadd.f32 %v1015, %v1205
    %v1207 = vpop.f32.mrf.mxu0
    %1208 = vmatprep.mubr.bf16.mxu0 0
    %1209 = vmatmul.mubr.bf16.gmra.mxu0 %v994
    %v1210 = vpop.f32.mrf.mxu0
    %v1211 = vadd.f32 %v1015, %v1210
    %v1212 = vpop.f32.mrf.mxu0
    %v1213 = vpop.f32.mrf.mxu0
    %v1214 = vadd.f32 %v1015, %v1213
    %v1215 = vpop.f32.mrf.mxu0
    %1216 = vmatprep.mubr.bf16.mxu0 0
    %1217 = vmatmul.mubr.bf16.gmra.mxu0 %v995
    %v1218 = vpop.f32.mrf.mxu0
    %v1219 = vadd.f32 %v1015, %v1218
    %v1220 = vpop.f32.mrf.mxu0
    %v1221 = vpop.f32.mrf.mxu0
    %v1222 = vadd.f32 %v1015, %v1221
    %v1223 = vpop.f32.mrf.mxu0
    %1224 = vdwg.mxu0
    %v1225 = vadd.f32 %v1099, %v33
    %v1226 = vadd.f32 %v1102, %v34
    %v1227 = vadd.f32 %v1107, %v35
    %v1228 = vadd.f32 %v1110, %v36
    %v1229 = vadd.f32 %v1115, %v37
    %v1230 = vadd.f32 %v1118, %v38
    %v1231 = vadd.f32 %v1123, %v39
    %v1232 = vadd.f32 %v1126, %v40
    %v1233 = vadd.f32 %v1131, %v41
    %v1234 = vadd.f32 %v1134, %v42
    %v1235 = vadd.f32 %v1139, %v43
    %v1236 = vadd.f32 %v1142, %v44
    %v1237 = vadd.f32 %v1147, %v45
    %v1238 = vadd.f32 %v1150, %v46
    %v1239 = vadd.f32 %v1155, %v47
    %v1240 = vadd.f32 %v1158, %v48
    %v1241 = vadd.f32 %v1163, %v49
    %v1242 = vadd.f32 %v1166, %v50
    %v1243 = vadd.f32 %v1171, %v51
    %v1244 = vadd.f32 %v1174, %v52
    %v1245 = vadd.f32 %v1179, %v53
    %v1246 = vadd.f32 %v1182, %v54
    %v1247 = vadd.f32 %v1187, %v55
    %v1248 = vadd.f32 %v1190, %v56
    %v1249 = vadd.f32 %v1195, %v57
    %v1250 = vadd.f32 %v1198, %v58
    %v1251 = vadd.f32 %v1203, %v59
    %v1252 = vadd.f32 %v1206, %v60
    %v1253 = vadd.f32 %v1211, %v61
    %v1254 = vadd.f32 %v1214, %v62
    %v1255 = vadd.f32 %v1219, %v63
    %v1256 = vadd.f32 %v1222, %v64
    %1257 = vst [vmem:[#allocation5] sm:$0xff] %v1225
    %1258 = vst [vmem:[#allocation5 + $0x8] sm:$0xff] %v1226
    %1259 = vst [vmem:[#allocation5 + $0x10] sm:$0xff] %v1227
    %1260 = vst [vmem:[#allocation5 + $0x18] sm:$0xff] %v1228
    %1261 = vst [vmem:[#allocation5 + $0x20] sm:$0xff] %v1229
    %1262 = vst [vmem:[#allocation5 + $0x28] sm:$0xff] %v1230
    %1263 = vst [vmem:[#allocation5 + $0x30] sm:$0xff] %v1231
    %1264 = vst [vmem:[#allocation5 + $0x38] sm:$0xff] %v1232
    %1265 = vst [vmem:[#allocation5 + $0x40] sm:$0xff] %v1233
    %1266 = vst [vmem:[#allocation5 + $0x48] sm:$0xff] %v1234
    %1267 = vst [vmem:[#allocation5 + $0x50] sm:$0xff] %v1235
    %1268 = vst [vmem:[#allocation5 + $0x58] sm:$0xff] %v1236
    %1269 = vst [vmem:[#allocation5 + $0x60] sm:$0xff] %v1237
    %1270 = vst [vmem:[#allocation5 + $0x68] sm:$0xff] %v1238
    %1271 = vst [vmem:[#allocation5 + $0x70] sm:$0xff] %v1239
    %1272 = vst [vmem:[#allocation5 + $0x78] sm:$0xff] %v1240
    %1273 = vst [vmem:[#allocation5 + $0x80] sm:$0xff] %v1241
    %1274 = vst [vmem:[#allocation5 + $0x88] sm:$0xff] %v1242
    %1275 = vst [vmem:[#allocation5 + $0x90] sm:$0xff] %v1243
    %1276 = vst [vmem:[#allocation5 + $0x98] sm:$0xff] %v1244
    %1277 = vst [vmem:[#allocation5 + $0xa0] sm:$0xff] %v1245
    %1278 = vst [vmem:[#allocation5 + $0xa8] sm:$0xff] %v1246
    %1279 = vst [vmem:[#allocation5 + $0xb0] sm:$0xff] %v1247
    %1280 = vst [vmem:[#allocation5 + $0xb8] sm:$0xff] %v1248
    %1281 = vst [vmem:[#allocation5 + $0xc0] sm:$0xff] %v1249
    %1282 = vst [vmem:[#allocation5 + $0xc8] sm:$0xff] %v1250
    %1283 = vst [vmem:[#allocation5 + $0xd0] sm:$0xff] %v1251
    %1284 = vst [vmem:[#allocation5 + $0xd8] sm:$0xff] %v1252
    %1285 = vst [vmem:[#allocation5 + $0xe0] sm:$0xff] %v1253
    %1286 = vst [vmem:[#allocation5 + $0xe8] sm:$0xff] %v1254
    %1287 = vst [vmem:[#allocation5 + $0xf0] sm:$0xff] %v1255
    %1288 = vst [vmem:[#allocation5 + $0xf8] sm:$0xff] %v1256
    // Predicated region
    $region22: #{tpu_custom_call.1} parent=1 // pred_check
      _
    $region23: #{tpu_custom_call.1} parent=1 // pred_check_branch
      %1290 = sbr.rel (0) target = $region25
    $region24: #{tpu_custom_call.1} parent=1 // pred_region
      %s1292 = ssub.s32 4096, 4096
      %1293 = vsyncadd [#allocation4], %s1292
      %s1294 = sshll.u32 [#allocation5], 4
      %s1295 = int_to_ptr.vmem [resolvable:$true] %s1294
      %1300 = dma.vmem_to_hbm [thread:$0]  %s1295, 4096, %s4, [#allocation4], 128, 128, 8
    $region25: #{tpu_custom_call.1} parent=1 // pred_fallthru
      _
    // Predicated region
    $region26: #{tpu_custom_call.1} parent=1 // pred_check
      _
    $region27: #{tpu_custom_call.1} parent=1 // pred_check_branch
      %1302 = sbr.rel (0) target = $region29
    $region28: #{tpu_custom_call.1} parent=1 // pred_region
      %1303 = dma.done [#allocation4], 4096
    $region29: #{tpu_custom_call.1} parent=1 // pred_fallthru
      _
    %1304 = vsyncpa [#allocation3], 1
    %1305 = vsyncpa [#allocation4], 1

</llo_original>
